<compile_context>
chip_gen: v5e
topology: v5e:2x2
jax: 0.10.0
libtpu: 0.0.40
codegen_flags: <defaults>
</compile_context>

<pallas_src>
import functools

import jax
import jax.numpy as jnp
from jax import lax
from jax.experimental import pallas as pl
from jax.experimental.pallas import tpu as pltpu


def _round_up(x, m):
    return ((x + m - 1) // m) * m


def _largest_div_tile_k(d, cap=2048):
    """Largest multiple of 128 that divides d and is <= cap (0 if none)."""
    best = 0
    t = 128
    while t <= min(d, cap):
        if d % t == 0:
            best = t
        t += 128
    return best


# -----------------------------------------------------------------------------
# Parameter fusion (done once at model-build time, NOT per forward call).
# -----------------------------------------------------------------------------
def fuse_cls_bbox_params(w_cls, b_cls, w_bbox, b_bbox, operand_dtype=None):
    """Fuse + zero-pad the two Linear heads into one lane-dense weight/bias.

    Args:
      w_cls:  (depth, num_classes)      pre-transposed nn.Linear weight.
      b_cls:  (num_classes,)
      w_bbox: (depth, num_classes * 4)  pre-transposed nn.Linear weight.
      b_bbox: (num_classes * 4,)
      operand_dtype: optional dtype (e.g. jnp.bfloat16) for the fused weight.
    Returns:
      w_fused: (depth, n_pad) with n_pad = max(128, round_up(5*C, 128))
      b_fused: (1, n_pad) float32
      num_classes
    """
    D, C = w_cls.shape
    assert w_bbox.shape == (D, 4 * C)
    c5 = 5 * C
    n_pad = max(128, _round_up(c5, 128))
    wdt = operand_dtype if operand_dtype is not None else w_cls.dtype
    w = jnp.zeros((D, n_pad), dtype=wdt)
    w = w.at[:, :C].set(w_cls.astype(wdt)).at[:, C:c5].set(w_bbox.astype(wdt))
    b = jnp.zeros((1, n_pad), dtype=jnp.float32)
    b = b.at[:, :C].set(b_cls.astype(jnp.float32))
    b = b.at[:, C:c5].set(b_bbox.astype(jnp.float32))
    return w, b, C


# -----------------------------------------------------------------------------
# Kernel: grid = (batch tiles, K tiles).  One fused matmul for both heads,
# accumulating directly into the (resident) f32 output block.
# -----------------------------------------------------------------------------
def _fused_head_kernel(x_ref, w_ref, b_ref, out_ref, *, num_classes, cls_pad):
    k = pl.program_id(1)

    @pl.when(k == 0)
    def _init():
        # Fold the bias into the accumulator (the output block itself).
        out_ref[...] = jnp.broadcast_to(b_ref[...], out_ref.shape)

    # Single MXU contraction for cls + bbox columns, f32 accumulation in-place.
    out_ref[...] += jnp.dot(x_ref[...], w_ref[...],
                            preferred_element_type=jnp.float32)

    @pl.when(k == pl.num_programs(1) - 1)
    def _finalize():
        # log_softmax only over the lane-aligned class slice; bbox / padding
        # columns are excluded from max / logsumexp via the -inf mask and
        # pass through unchanged (they already hold acc + bias).
        y = out_ref[:, :cls_pad]                               # (TB, cls_pad)
        col = lax.broadcasted_iota(jnp.int32, y.shape, 1)
        is_cls = col < num_classes
        masked = jnp.where(is_cls, y, -jnp.inf)
        m = jnp.max(masked, axis=-1, keepdims=True)
        e = jnp.exp(jnp.where(is_cls, y - m, -jnp.inf))        # exp(-inf) = 0
        lse = jnp.log(jnp.sum(e, axis=-1, keepdims=True))
        out_ref[:, :cls_pad] = jnp.where(is_cls, y - m - lse, y).astype(
            out_ref.dtype)


# -----------------------------------------------------------------------------
# Forward wrapper.
# -----------------------------------------------------------------------------
_RESIDENT_BUDGET = 40 * 1024 * 1024   # keep resident-W working set v7x-safe


def cls_bbox_head(x, w_fused, b_fused, num_classes, *, tile_b=None, tile_k=None):
    """
    Args:
      x:        (B, depth) RoI features (C*H*W already flattened, matching the
                PyTorch .view() contract).
      w_fused:  (depth, n_pad) fused weight from fuse_cls_bbox_params().
      b_fused:  (1, n_pad) float32 fused bias.
    Returns:
      cls_prob: (B, num_classes) log-probabilities.
      bbox_reg: (B, num_classes, 4)
    """
    B, D = x.shape
    Dw, n_pad = w_fused.shape
    assert Dw == D
    C = num_classes
    c5 = 5 * C
    cls_pad = min(n_pad, _round_up(C, 128))

    # Match the matmul operand dtype of the (pre-cast) fused weight.
    # TODO(synk): in a full model, produce x already in this dtype upstream so
    # this cast does not become a standalone HBM pass.
    if x.dtype != w_fused.dtype:
        x = x.astype(w_fused.dtype)

    # ---- batch tiling: big tiles, but >= 2 tiles when B > 16 (2 TCs on v7x) --
    if tile_b is None:
        if B <= 16:
            tile_b = _round_up(B, 8)
        else:
            tile_b = min(512, _round_up(-(-B // 2), 8))
    b_pad = _round_up(B, tile_b)

    # ---- K tiling: W VMEM-resident when it fits, else large divisor tile ----
    itm_x = x.dtype.itemsize
    itm_w = w_fused.dtype.itemsize
    resident_need = (2 * D * n_pad * itm_w          # fused W (double-buffered)
                     + 2 * tile_b * D * itm_x       # x tiles
                     + 2 * tile_b * n_pad * 4       # resident f32 output block
                     + 2 * n_pad * 4)               # bias
    if tile_k is None:
        if resident_need <= _RESIDENT_BUDGET:
            tile_k = D                               # whole contraction at once
        else:
            tile_k = _largest_div_tile_k(D, cap=2048)
            if tile_k == 0:
                # Rare: depth not a multiple of 128 -> zero-pad K (zeros
                # contribute nothing to the contraction).
                tile_k = min(2048, _round_up(D, 128))

    d_pad = _round_up(D, tile_k)
    w = w_fused
    if d_pad != D:
        x = jnp.pad(x, ((0, 0), (0, d_pad - D)))
        w = jnp.pad(w, ((0, d_pad - D), (0, 0)))
    if b_pad != B:
        x = jnp.pad(x, ((0, b_pad - B), (0, 0)))

    grid = (b_pad // tile_b, d_pad // tile_k)

    # ---- VMEM limit derived from the actual working set ----
    need = (2 * tile_k * n_pad * itm_w
            + 2 * tile_b * tile_k * itm_x
            + 2 * tile_b * n_pad * 4
            + 2 * n_pad * 4)
    vmem_limit = int(min(max(need * 5 // 4 + (2 << 20), 32 << 20), 96 << 20))

    out = pl.pallas_call(
        functools.partial(_fused_head_kernel, num_classes=C, cls_pad=cls_pad),
        out_shape=jax.ShapeDtypeStruct((b_pad, n_pad), jnp.float32),
        grid_spec=pltpu.PrefetchScalarGridSpec(
            num_scalar_prefetch=0,
            grid=grid,
            in_specs=[
                pl.BlockSpec((tile_b, tile_k), lambda i, k: (i, k)),   # x
                pl.BlockSpec((tile_k, n_pad), lambda i, k: (k, 0)),    # fused W
                pl.BlockSpec((1, n_pad), lambda i, k: (0, 0)),         # fused b
            ],
            out_specs=pl.BlockSpec((tile_b, n_pad), lambda i, k: (i, 0)),
        ),
        compiler_params=pltpu.CompilerParams(
            dimension_semantics=("parallel", "arbitrary"),
            vmem_limit_bytes=vmem_limit,
        ),
    )(x, w, b_fused)

    cls_prob = out[:B, :C]
    bbox_reg = out[:B, C:c5].reshape(B, C, 4)
    return cls_prob, bbox_reg


# -----------------------------------------------------------------------------
# Reference + self-test
# -----------------------------------------------------------------------------
def _reference(x, w_cls, b_cls, w_bbox, b_bbox):
    cls_logits = x @ w_cls + b_cls
    cls_prob = jax.nn.log_softmax(cls_logits, axis=1)
    bbox = x @ w_bbox + b_bbox
    return cls_prob, bbox.reshape(x.shape[0], -1, 4)


def _make_params(key, depth, num_classes):
    kwc, kbc, kwb, kbb = jax.random.split(key, 4)
    bound = 1.0 / (depth ** 0.5)
    w_cls = jax.random.uniform(kwc, (depth, num_classes),
                               minval=-bound, maxval=bound, dtype=jnp.float32)
    b_cls = jax.random.uniform(kbc, (num_classes,),
                               minval=-bound, maxval=bound, dtype=jnp.float32)
    w_bbox = jax.random.uniform(kwb, (depth, num_classes * 4),
                                minval=-bound, maxval=bound, dtype=jnp.float32)
    b_bbox = jax.random.uniform(kbb, (num_classes * 4,),
                                minval=-bound, maxval=bound, dtype=jnp.float32)
    return w_cls, b_cls, w_bbox, b_bbox


if __name__ == "__main__":
    key = jax.random.PRNGKey(0)
    k1, k2, k3 = jax.random.split(key, 3)

    # ---- Test 1: small RoI batch, f32 path (exact check, resident-W path) ----
    B, depth, num_classes = 8, 32, 8
    x = jax.random.normal(k1, (B, depth), dtype=jnp.float32)
    w_cls, b_cls, w_bbox, b_bbox = _make_params(k2, depth, num_classes)

    wf, bf, C = fuse_cls_bbox_params(w_cls, b_cls, w_bbox, b_bbox)
    cls_prob, bbox_reg = cls_bbox_head(x, wf, bf, C)
    jax.block_until_ready((cls_prob, bbox_reg))
    ref_cls, ref_bbox = _reference(x, w_cls, b_cls, w_bbox, b_bbox)
    assert cls_prob.shape == (B, num_classes)
    assert bbox_reg.shape == (B, num_classes, 4)
    assert jnp.allclose(cls_prob, ref_cls, atol=1e-4, rtol=1e-4)
    assert jnp.allclose(bbox_reg, ref_bbox, atol=1e-4, rtol=1e-4)

    # ---- Test 1b: bf16 fused weights (fast path for v5e/v6e/v7x) ----
    wf16, bf16_, _ = fuse_cls_bbox_params(w_cls, b_cls, w_bbox, b_bbox,
                                          operand_dtype=jnp.bfloat16)
    cls_bf, bbox_bf = cls_bbox_head(x, wf16, bf16_, C)
    jax.block_until_ready((cls_bf, bbox_bf))
    assert jnp.allclose(cls_bf, ref_cls, atol=5e-2, rtol=5e-2)
    assert jnp.allclose(bbox_bf, ref_bbox, atol=5e-2, rtol=5e-2)

    # ---- Test 2: multi batch-tile + multi K-tile path (accumulation in out) --
    B2, depth2, num_classes2 = 24, 256, 10
    x2 = jax.random.normal(k3, (B2, depth2), dtype=jnp.float32)
    p2 = _make_params(jax.random.PRNGKey(7), depth2, num_classes2)
    wf2, bf2, C2 = fuse_cls_bbox_params(*p2)
    cls2, bbox2 = cls_bbox_head(x2, wf2, bf2, C2, tile_b=16, tile_k=128)
    jax.block_until_ready((cls2, bbox2))
    r_cls2, r_bbox2 = _reference(x2, *p2)
    assert cls2.shape == (B2, num_classes2)
    assert bbox2.shape == (B2, num_classes2, 4)
    assert jnp.allclose(cls2, r_cls2, atol=1e-4, rtol=1e-4)
    assert jnp.allclose(bbox2, r_bbox2, atol=1e-4, rtol=1e-4)

    print("KERNEL_OK")
</pallas_src>

<mosaic_0001>
module attributes {stable_mosaic.version = 11 : i64} {
  func.func @_fused_head_kernel(%arg0: i32, %arg1: i32, %arg2: memref<8x32xf32, #tpu.memory_space<vmem>>, %arg3: memref<32x128xf32, #tpu.memory_space<vmem>>, %arg4: memref<1x128xf32, #tpu.memory_space<vmem>>, %arg5: memref<8x128xf32, #tpu.memory_space<vmem>>) attributes {dimension_semantics = [#tpu.dimension_semantics<parallel>, #tpu.dimension_semantics<arbitrary>], iteration_bounds = array<i64: 1, 1>, scalar_prefetch = 0 : i64, scratch_operands = 0 : i64, tpu.core_type = #tpu.core_type<tc>, window_params = [{transform_indices = @transform_0, window_bounds = array<i64: 8, 32>}, {transform_indices = @transform_1, window_bounds = array<i64: 32, 128>}, {pipeline_mode = #tpu.pipeline_mode<synchronous>, transform_indices = @transform_2, window_bounds = array<i64: 1, 128>}, {transform_indices = @transform_3, window_bounds = array<i64: 8, 128>}]} {
    %c0_i32 = arith.constant 0 : i32
    %0 = arith.cmpi eq, %arg1, %c0_i32 : i32
    %1 = arith.extui %0 : i1 to i32
    %c0_i32_0 = arith.constant 0 : i32
    %2 = arith.cmpi ne, %1, %c0_i32_0 : i32
    scf.if %2 {
      %c0_10 = arith.constant 0 : index
      %c0_11 = arith.constant 0 : index
      %12 = vector.load %arg4[%c0_10, %c0_11] : memref<1x128xf32, #tpu.memory_space<vmem>>, vector<1x128xf32>
      %13 = vector.shape_cast %12 : vector<1x128xf32> to vector<1x128xf32>
      %14 = vector.broadcast %13 : vector<1x128xf32> to vector<8x128xf32>
      %c0_12 = arith.constant 0 : index
      %c0_13 = arith.constant 0 : index
      %15 = vector.load %arg5[%c0_12, %c0_13] : memref<8x128xf32, #tpu.memory_space<vmem>>, vector<8x128xf32>
      tpu.vector_store %arg5[%c0_12, %c0_13], %14 {strides = array<i32>} : memref<8x128xf32, #tpu.memory_space<vmem>>, vector<8x128xf32>,
    } else {
    }
    %c0 = arith.constant 0 : index
    %c0_1 = arith.constant 0 : index
    %3 = vector.load %arg5[%c0, %c0_1] : memref<8x128xf32, #tpu.memory_space<vmem>>, vector<8x128xf32>
    %c0_2 = arith.constant 0 : index
    %c0_3 = arith.constant 0 : index
    %4 = vector.load %arg2[%c0_2, %c0_3] : memref<8x32xf32, #tpu.memory_space<vmem>>, vector<8x32xf32>
    %c0_4 = arith.constant 0 : index
    %c0_5 = arith.constant 0 : index
    %5 = vector.load %arg3[%c0_4, %c0_5] : memref<32x128xf32, #tpu.memory_space<vmem>>, vector<32x128xf32>
    %cst = arith.constant dense<0.000000e+00> : vector<8x128xf32>
    %6 = tpu.matmul %4, %5, %cst {dimension_numbers = #tpu.dot_dimension_numbers<[1], [0], [0], [1], [0, 0, 1, 1], [], []>} : vector<8x32xf32>, vector<32x128xf32>, vector<8x128xf32> -> vector<8x128xf32>
    %7 = arith.addf %3, %6 : vector<8x128xf32>
    %c0_6 = arith.constant 0 : index
    %c0_7 = arith.constant 0 : index
    %8 = vector.load %arg5[%c0_6, %c0_7] : memref<8x128xf32, #tpu.memory_space<vmem>>, vector<8x128xf32>
    tpu.vector_store %arg5[%c0_6, %c0_7], %7 {strides = array<i32>} : memref<8x128xf32, #tpu.memory_space<vmem>>, vector<8x128xf32>,
    %c0_i32_8 = arith.constant 0 : i32
    %9 = arith.cmpi eq, %arg1, %c0_i32_8 : i32
    %10 = arith.extui %9 : i1 to i32
    %c0_i32_9 = arith.constant 0 : i32
    %11 = arith.cmpi ne, %10, %c0_i32_9 : i32
    scf.if %11 {
      %c0_10 = arith.constant 0 : index
      %c0_11 = arith.constant 0 : index
      %12 = vector.load %arg5[%c0_10, %c0_11] : memref<8x128xf32, #tpu.memory_space<vmem>>, vector<8x128xf32>
      %13 = tpu.iota {dimensions = array<i32: 1>} : vector<8x128xi32>
      %c8_i32 = arith.constant 8 : i32
      %14 = vector.broadcast %c8_i32 : i32 to vector<8x128xi32>
      %15 = arith.cmpi slt, %13, %14 : vector<8x128xi32>
      %cst_12 = arith.constant 0xFF800000 : f32
      %16 = vector.broadcast %cst_12 : f32 to vector<8x128xf32>
      %17 = arith.select %15, %12, %16 : vector<8x128xi1>, vector<8x128xf32>
      %cst_13 = arith.constant dense<0xFF800000> : vector<8xf32>
      %18 = vector.multi_reduction <maximumf>, %17, %cst_13 [1] : vector<8x128xf32> to vector<8xf32>
      %19 = vector.shape_cast %18 : vector<8xf32> to vector<8x1xf32>
      %20 = vector.broadcast %19 : vector<8x1xf32> to vector<8x128xf32>
      %21 = arith.subf %12, %20 : vector<8x128xf32>
      %cst_14 = arith.constant 0xFF800000 : f32
      %22 = vector.broadcast %cst_14 : f32 to vector<8x128xf32>
      %23 = arith.select %15, %21, %22 : vector<8x128xi1>, vector<8x128xf32>
      %24 = math.exp %23 : vector<8x128xf32>
      %cst_15 = arith.constant dense<0.000000e+00> : vector<8xf32>
      %25 = vector.multi_reduction <add>, %24, %cst_15 [1] : vector<8x128xf32> to vector<8xf32>
      %26 = vector.shape_cast %25 : vector<8xf32> to vector<8x1xf32>
      %27 = math.log %26 : vector<8x1xf32>
      %28 = vector.broadcast %19 : vector<8x1xf32> to vector<8x128xf32>
      %29 = arith.subf %12, %28 : vector<8x128xf32>
      %30 = vector.broadcast %27 : vector<8x1xf32> to vector<8x128xf32>
      %31 = arith.subf %29, %30 : vector<8x128xf32>
      %32 = arith.select %15, %31, %12 : vector<8x128xi1>, vector<8x128xf32>
      %c0_16 = arith.constant 0 : index
      %c0_17 = arith.constant 0 : index
      %33 = vector.load %arg5[%c0_16, %c0_17] : memref<8x128xf32, #tpu.memory_space<vmem>>, vector<8x128xf32>
      tpu.vector_store %arg5[%c0_16, %c0_17], %32 {strides = array<i32>} : memref<8x128xf32, #tpu.memory_space<vmem>>, vector<8x128xf32>,
    } else {
    }
    return
  }
  func.func @transform_0(%arg0: i32, %arg1: i32) -> (i32, i32) {
    %c0_i32 = arith.constant 0 : i32
    return %arg0, %arg1 : i32, i32
  }
  func.func @transform_1(%arg0: i32, %arg1: i32) -> (i32, i32) {
    %c0_i32 = arith.constant 0 : i32
    %c0_i32_0 = arith.constant 0 : i32
    return %arg1, %c0_i32 : i32, i32
  }
  func.func @transform_2(%arg0: i32, %arg1: i32) -> (i32, i32) {
    %c0_i32 = arith.constant 0 : i32
    %c0_i32_0 = arith.constant 0 : i32
    %c0_i32_1 = arith.constant 0 : i32
    return %c0_i32, %c0_i32_0 : i32, i32
  }
  func.func @transform_3(%arg0: i32, %arg1: i32) -> (i32, i32) {
    %c0_i32 = arith.constant 0 : i32
    %c0_i32_0 = arith.constant 0 : i32
    return %arg0, %c0_i32 : i32, i32
  }
}

</mosaic_0001>

<llo_original>
// kernel: tpu_custom_call.1
$region0: #{tpu_custom_call.1}
  #allocation0 [shape = 'u32[]', space=smem, size = 0x4, offset = 0x4, fixed_abs, tag = 'smem constant byte address 0x4 - core index']
  #allocation1 [shape = 'u32[72,128]{1,0:T(1,128)}', space=vmem, size = 0x9000, scoped, tag = 'internal scratch']
  %s0 = inlined_call_operand.hbm [shape: f32[8,32], index: 0, kind: input, shape index: {}]
  %s1 = inlined_call_operand.hbm [shape: f32[32,128], index: 1, kind: input, shape index: {}]
  %s2 = inlined_call_operand.vmem [shape: f32[1,128], index: 2, kind: input, shape index: {}]
  %s3 = inlined_call_operand.hbm [shape: f32[8,128], index: 3, kind: output, shape index: {}]
  %s4 = sld [smem:[#allocation0]]
  $region38: #{tpu_custom_call.1} parent=0
    _
  %s6 = ssub.s32 1, %s4
  %s7 = scalar_select 0, %s6, %s4
  $region1: #{tpu_custom_call.1} parent=0
    #allocation2 [shape = 'u8[4096]{0}', space=vmem, size = 0x1000, scoped, tag = 'input window, operand 0, single buffered']
    #allocation3 [shape = 's32[1]{0}', space=sflag, size = 0x4, scoped, tag = 'scoped memory for tpu_custom_call.1']
    #allocation4 [shape = 's32[1]{0}', space=sflag, size = 0x4, scoped, tag = 'scoped memory for tpu_custom_call.1']
    #allocation5 [shape = 'u8[16384]{0}', space=vmem, size = 0x4000, scoped, tag = 'input window, operand 1, single buffered']
    #allocation6 [shape = 's32[1]{0}', space=sflag, size = 0x4, scoped, tag = 'scoped memory for tpu_custom_call.1']
    #allocation7 [shape = 'u8[4096]{0}', space=vmem, size = 0x1000, scoped, tag = 'output window, operand 0, single buffered']
    %8 = vsyncpa [#allocation3], 0
    %9 = vsyncpa [#allocation6], 0
    %10 = vsyncpa [#allocation4], 0
    // Predicated region
    $region2: #{tpu_custom_call.1} parent=1 // pred_check
      _
    $region3: #{tpu_custom_call.1} parent=1 // pred_check_branch
      %12 = sbr.rel (0) target = $region5
    $region4: #{tpu_custom_call.1} parent=1 // pred_region
      %14 = vsyncadd [#allocation3], 0
      %s16 = sshll.u32 %s0, 4
      %s17 = int_to_ptr.hbm [resolvable:$true] %s16
      %s18 = sshll.u32 [#allocation2], 4
      %s19 = int_to_ptr.vmem [resolvable:$true] %s18
      %21 = dma.hbm_to_vmem [thread:$0]  %s17, 128, %s19, [#allocation3]
    $region5: #{tpu_custom_call.1} parent=1 // pred_fallthru
      _
    // Predicated region
    $region6: #{tpu_custom_call.1} parent=1 // pred_check
      _
    $region7: #{tpu_custom_call.1} parent=1 // pred_check_branch
      %23 = sbr.rel (0) target = $region9
    $region8: #{tpu_custom_call.1} parent=1 // pred_region
      %25 = vsyncadd [#allocation6], 0
      %s26 = sshll.u32 %s1, 4
      %s27 = int_to_ptr.hbm [resolvable:$true] %s26
      %s28 = sshll.u32 [#allocation5], 4
      %s29 = int_to_ptr.vmem [resolvable:$true] %s28
      %34 = dma.hbm_to_vmem [thread:$0]  %s27, 512, %s29, [#allocation6], 128, 128, 8
    $region9: #{tpu_custom_call.1} parent=1 // pred_fallthru
      _
    // Predicated region
    $region10: #{tpu_custom_call.1} parent=1 // pred_check
      _
    $region11: #{tpu_custom_call.1} parent=1 // pred_check_branch
      %36 = sbr.rel (0) target = $region13
    $region12: #{tpu_custom_call.1} parent=1 // pred_region
      _
    $region13: #{tpu_custom_call.1} parent=1 // pred_fallthru
      _
    // Predicated region
    $region14: #{tpu_custom_call.1} parent=1 // pred_check
      _
    $region15: #{tpu_custom_call.1} parent=1 // pred_check_branch
      %38 = sbr.rel (0) target = $region17
    $region16: #{tpu_custom_call.1} parent=1 // pred_region
      %40 = dma.done [#allocation3], 128
    $region17: #{tpu_custom_call.1} parent=1 // pred_fallthru
      _
    // Predicated region
    $region18: #{tpu_custom_call.1} parent=1 // pred_check
      _
    $region19: #{tpu_custom_call.1} parent=1 // pred_check_branch
      %42 = sbr.rel (0) target = $region21
    $region20: #{tpu_custom_call.1} parent=1 // pred_region
      %44 = dma.done [#allocation6], 512
    $region21: #{tpu_custom_call.1} parent=1 // pred_fallthru
      _
    %p45 = scmp.eq.s32.totalorder 0, 0
    // Predicated region
    $region22: #{tpu_custom_call.1} parent=1 // pred_check
      %p46 = pneg %p45
    $region23: #{tpu_custom_call.1} parent=1 // pred_check_branch
      %48 = sbr.rel (%p46) target = $region25
    $region24: #{tpu_custom_call.1} parent=1 // pred_region
      %v49 = vld [vmem:[%s2] sm:$0x1]
      %v51 = vperm.slane %v49, 0
      %53 = vst [vmem:[#allocation7] sm:$0xff] %v51
    $region25: #{tpu_custom_call.1} parent=1 // pred_fallthru
      _
    %v54 = vld [vmem:[#allocation7] sm:$0xff]
    %v55 = vld [vmem:[#allocation2] sm:$0xff]
    %v56 = vld [vmem:[#allocation5] sm:$0xff]
    %v57 = vld [vmem:[#allocation5 + $0x8] sm:$0xff]
    %v58 = vld [vmem:[#allocation5 + $0x10] sm:$0xff]
    %v59 = vld [vmem:[#allocation5 + $0x18] sm:$0xff]
    %vm60 = vcmask 261120
    %v62 = vsel %vm60, %v55, 0
    %64 = vmatpush.msra.mxu0 0.0
    %65 = vmatpush.msra.mxu0 0.0
    %66 = vmatpush.msra.mxu0 0.0
    %67 = vmatpush.msra.mxu0 0.0
    %68 = vmatpush.msra.mxu0 0.0
    %69 = vmatpush.msra.mxu0 0.0
    %70 = vmatpush.msra.mxu0 0.0
    %71 = vmatpush.msra.mxu0 0.0
    %72 = vmatpush.msra.mxu0 0.0
    %73 = vmatpush.msra.mxu0 0.0
    %74 = vmatpush.msra.mxu0 0.0
    %75 = vmatpush.msra.mxu0 0.0
    %76 = vmatpush.msra.mxu0 %v59
    %77 = vmatpush.msra.mxu0 %v58
    %78 = vmatpush.msra.mxu0 %v57
    %79 = vmatpush.msra.mxu0 %v56
    %80 = vmatmul.f32.gmra.mxu0 %v62
    %v81 = vpop.f32.mrf.mxu0
    %v82 = vadd.f32 0.0, %v81
    %83 = vdwg.mxu0
    %v84 = vadd.f32 %v54, %v82
    %85 = vst [vmem:[#allocation7] sm:$0xff] %v84
    // Predicated region
    $region26: #{tpu_custom_call.1} parent=1 // pred_check
      %p86 = pneg %p45
    $region27: #{tpu_custom_call.1} parent=1 // pred_check_branch
      %88 = sbr.rel (%p86) target = $region29
    $region28: #{tpu_custom_call.1} parent=1 // pred_region
      %v89 = vld [vmem:[#allocation7] sm:$0xff]
      %v90 = vlaneseq
      %v91 = vand.u32 %v90, 127
      %vm92 = vcmp.lt.s32.totalorder %v91, 8
      %v93 = vsel %vm92, %v89, -inf
      %94 = vmax.xlane.f32.xlu0 %v93
      %v95 = vpop.xlane.xlu0 %94
      %v96 = vsub.f32 %v89, %v95
      %v97 = vsel %vm92, %v96, -inf
      %v98 = vmul.f32 %v97, 1.442695
      %v99 = vpow.pop %v98
      %100 = vadd.xlane.f32.xlu0 %v99
      %v101 = vpop.xlane.xlu0 %100
      %v102 = vlog2.pop %v101
      %v103 = vmul.f32 %v102, 0.6931472
      %v104 = vsub.f32 %v96, %v103
      %v105 = vsel %vm92, %v104, %v89
      %106 = vst [vmem:[#allocation7] sm:$0xff] %v105
    $region29: #{tpu_custom_call.1} parent=1 // pred_fallthru
      _
    // Predicated region
    $region30: #{tpu_custom_call.1} parent=1 // pred_check
      _
    $region31: #{tpu_custom_call.1} parent=1 // pred_check_branch
      %108 = sbr.rel (0) target = $region33
    $region32: #{tpu_custom_call.1} parent=1 // pred_region
      %110 = vsyncadd [#allocation4], 0
      %s112 = sshll.u32 [#allocation7], 4
      %s113 = int_to_ptr.vmem [resolvable:$true] %s112
      %s114 = sshll.u32 %s3, 4
      %s115 = int_to_ptr.hbm [resolvable:$true] %s114
      %117 = dma.vmem_to_hbm [thread:$0]  %s113, 128, %s115, [#allocation4]
    $region33: #{tpu_custom_call.1} parent=1 // pred_fallthru
      _
    // Predicated region
    $region34: #{tpu_custom_call.1} parent=1 // pred_check
      _
    $region35: #{tpu_custom_call.1} parent=1 // pred_check_branch
      %119 = sbr.rel (0) target = $region37
    $region36: #{tpu_custom_call.1} parent=1 // pred_region
      %121 = dma.done [#allocation4], 128
    $region37: #{tpu_custom_call.1} parent=1 // pred_fallthru
      _
    %122 = vsyncpa [#allocation3], 1
    %123 = vsyncpa [#allocation6], 1
    %124 = vsyncpa [#allocation4], 1

</llo_original>
